<compile_context>
chip_gen: v5e
topology: v5e:2x2
jax: 0.10.0
libtpu: 0.0.40
codegen_flags: <defaults>
</compile_context>

<pallas_src>
import math
import functools
from typing import NamedTuple

import jax
import jax.numpy as jnp
from jax import lax
from jax.experimental import pallas as pl
from jax.experimental.pallas import tpu as pltpu

_INV_SQRT2 = 1.0 / math.sqrt(2.0)
_LANE = 128
_SUBLANE = 8
_DEFAULT_HID_CHUNK = 1024  # hidden-dim chunk size (multiple of 128)


def _round_up(x, m):
    return ((x + m - 1) // m) * m


def _cdiv(a, b):
    return -(-a // b)


class MlpParams(NamedTuple):
    """Padded / pre-cast MLP parameters (built once, reused every call)."""
    w1: jax.Array   # (d_in_p, d_hid_p)  bf16, zero padded
    b1: jax.Array   # (1, d_hid_p)       f32,  zero padded
    w2: jax.Array   # (d_hid_p, d_out_p) bf16, zero padded
    b2: jax.Array   # (1, d_out_p)       f32,  zero padded
    d_in: int
    d_out: int
    hid_chunk: int  # chunk size used for the hidden reduction grid axis


def prepare_mlp_params(w1, b1, w2, b2, *, hid_chunk=_DEFAULT_HID_CHUNK):
    """Pad feature dims to lane multiples and pre-cast weights to bf16.

    Hoisted out of the per-call path so the forward never re-reads f32 weights
    or re-writes padded copies. Zero padding is numerically inert: padded
    hidden columns have b1 = 0 so GELU(0) = 0, and the matching w2 rows are 0.
    """
    d_in, d_hid = w1.shape
    d_hid2, d_out = w2.shape
    assert d_hid == d_hid2 and b1.shape == (d_hid,) and b2.shape == (d_out,)

    d_in_p = _round_up(d_in, _LANE)
    d_out_p = _round_up(d_out, _LANE)
    d_hid_p = _round_up(d_hid, _LANE)
    hk = min(_round_up(hid_chunk, _LANE), d_hid_p)
    d_hid_p = _round_up(d_hid_p, hk)          # reduction axis divides exactly

    w1_p = jnp.zeros((d_in_p, d_hid_p), jnp.bfloat16).at[:d_in, :d_hid].set(
        w1.astype(jnp.bfloat16))
    b1_p = jnp.zeros((1, d_hid_p), jnp.float32).at[0, :d_hid].set(
        b1.astype(jnp.float32))
    w2_p = jnp.zeros((d_hid_p, d_out_p), jnp.bfloat16).at[:d_hid, :d_out].set(
        w2.astype(jnp.bfloat16))
    b2_p = jnp.zeros((1, d_out_p), jnp.float32).at[0, :d_out].set(
        b2.astype(jnp.float32))
    return MlpParams(w1_p, b1_p, w2_p, b2_p, d_in, d_out, hk)


def _mlp_kernel(x_ref, w1_ref, b1_ref, w2_ref, b2_ref, o_ref, acc_ref):
    k = pl.program_id(1)

    @pl.when(k == 0)
    def _():
        acc_ref[...] = jnp.zeros_like(acc_ref)

    # fc1 on the MXU: bf16 inputs, f32 accumulation.
    x = x_ref[...].astype(jnp.bfloat16)
    h = jnp.dot(x, w1_ref[...], preferred_element_type=jnp.float32)
    h = h + b1_ref[...]                                   # f32 bias
    # Exact erf-GELU (PyTorch nn.GELU default), kept in f32.
    h = 0.5 * h * (1.0 + lax.erf(h * _INV_SQRT2))
    # dropout(p=0.0) == identity.
    # fc2 partial product over this hidden chunk, accumulated in f32 scratch.
    acc_ref[...] += jnp.dot(h.astype(jnp.bfloat16), w2_ref[...],
                            preferred_element_type=jnp.float32)

    @pl.when(k == pl.num_programs(1) - 1)
    def _():
        o_ref[...] = (acc_ref[...] + b2_ref[...]).astype(o_ref.dtype)


def _choose_tm(n_tok, tm_max):
    """Token tile: large for MXU feed, but avoid gross tail waste and keep
    >= 2 'parallel' grid steps when possible (v7x has 2 TensorCores)."""
    tm_cap = max(_SUBLANE,
                 min(_round_up(tm_max, _SUBLANE), _round_up(n_tok, _SUBLANE)))
    cands = {tm_cap}
    t = tm_cap
    while t >= 64:
        cands.add(_round_up(t, _SUBLANE))
        t //= 2

    def key(t):
        steps = _cdiv(n_tok, t)
        waste = steps * t - n_tok
        return (steps < 2, waste, -t)

    return min(cands, key=key)


def _wspec(shape, index_map, mode):
    if mode is None:
        return pl.BlockSpec(shape, index_map)
    return pl.BlockSpec(shape, index_map, pipeline_mode=mode)


@functools.partial(
    jax.jit,
    static_argnames=("d_in", "d_out", "hid_chunk", "tm", "single_buffer_weights"))
def _mlp_pallas_impl(x, w1_p, b1_p, w2_p, b2_p, *, d_in, d_out, hid_chunk, tm,
                     single_buffer_weights):
    n_tok, d_in_x = x.shape
    assert d_in_x == d_in, "x feature dim does not match prepared params"
    d_in_p, d_hid_p = w1_p.shape
    d_out_p = w2_p.shape[1]
    hk = hid_chunk
    n_hid_chunks = d_hid_p // hk

    tm_eff = _choose_tm(n_tok, tm)
    n_tok_tiles = _cdiv(n_tok, tm_eff)   # tail block handled by Pallas masking

    # Activations: only copy/pad when the feature dim actually needs padding;
    # otherwise feed x directly and cast to bf16 inside the kernel (saves a
    # full HBM read+write pass over x).
    if d_in == d_in_p:
        x_in = x
    else:
        x_in = jnp.zeros((n_tok, d_in_p), jnp.bfloat16).at[:, :d_in].set(
            x.astype(jnp.bfloat16))

    # Resident (grid-constant) operands don't need double buffers.
    const_mode = pl.Buffered(1) if single_buffer_weights else None
    w_mode = const_mode if n_hid_chunks == 1 else None   # streamed when chunked

    # Explicit VMEM budget (default scoped limit: 16 MiB v5e / 32 MiB v6e,v7x).
    w_bufs = 1 if (single_buffer_weights and n_hid_chunks == 1) else 2
    vmem_bytes = (
        2 * tm_eff * d_in_p * x_in.dtype.itemsize        # x tile (double buffered)
        + 2 * tm_eff * d_out_p * x.dtype.itemsize        # out tile (double buffered)
        + w_bufs * d_in_p * hk * 2                       # w1 chunk(s), bf16
        + w_bufs * hk * 4                                # b1 chunk(s), f32
        + w_bufs * hk * d_out_p * 2                      # w2 chunk(s), bf16
        + d_out_p * 4                                    # b2 (resident)
        + tm_eff * d_out_p * 4                           # f32 accumulator scratch
        + tm_eff * hk * 6                                # h intermediate (f32 + bf16)
    )
    vmem_limit = int(min(max(1.4 * vmem_bytes + (2 << 20), 16 << 20), 64 << 20))

    cost = pl.CostEstimate(
        flops=2 * n_tok * (d_in_p * d_hid_p + d_hid_p * d_out_p),
        transcendentals=n_tok * d_hid_p,
        bytes_accessed=(x_in.size * x_in.dtype.itemsize
                        + w1_p.size * 2 + w2_p.size * 2
                        + b1_p.size * 4 + b2_p.size * 4
                        + n_tok * d_out_p * x.dtype.itemsize),
    )

    out_p = pl.pallas_call(
        _mlp_kernel,
        out_shape=jax.ShapeDtypeStruct((n_tok, d_out_p), x.dtype),
        grid_spec=pltpu.PrefetchScalarGridSpec(
            num_scalar_prefetch=0,
            grid=(n_tok_tiles, n_hid_chunks),
            in_specs=[
                pl.BlockSpec((tm_eff, d_in_p), lambda i, k: (i, 0)),       # x tile
                _wspec((d_in_p, hk), lambda i, k: (0, k), w_mode),         # w1 chunk
                _wspec((1, hk), lambda i, k: (0, k), w_mode),              # b1 chunk
                _wspec((hk, d_out_p), lambda i, k: (k, 0), w_mode),        # w2 chunk
                _wspec((1, d_out_p), lambda i, k: (0, 0), const_mode),     # b2
            ],
            out_specs=pl.BlockSpec((tm_eff, d_out_p), lambda i, k: (i, 0)),
            scratch_shapes=[pltpu.VMEM((tm_eff, d_out_p), jnp.float32)],
        ),
        compiler_params=pltpu.CompilerParams(
            dimension_semantics=("parallel", "arbitrary"),
            vmem_limit_bytes=vmem_limit,
        ),
        cost_estimate=cost,
    )(x_in, w1_p, b1_p, w2_p, b2_p)

    return out_p[:, :d_out]


def mlp_pallas(x, params: MlpParams, *, tm=256):
    """Fused fc1 -> GELU -> fc2. x: (tokens, in_features)."""
    kwargs = dict(d_in=params.d_in, d_out=params.d_out,
                  hid_chunk=params.hid_chunk, tm=tm)
    try:
        return _mlp_pallas_impl(x, params.w1, params.b1, params.w2, params.b2,
                                single_buffer_weights=True, **kwargs)
    except Exception:
        # Some jax versions reject pl.Buffered(1); fall back to default buffering.
        return _mlp_pallas_impl(x, params.w1, params.b1, params.w2, params.b2,
                                single_buffer_weights=False, **kwargs)


def mlp_reference(x, w1, b1, w2, b2):
    h = x @ w1 + b1
    h = 0.5 * h * (1.0 + lax.erf(h * _INV_SQRT2))
    return h @ w2 + b2


def _run_case(key, x_shape, hidden, out_features=None, *, tm=256,
              hid_chunk=_DEFAULT_HID_CHUNK):
    c = x_shape[-1]
    o = out_features or c
    k_x, k_w1, k_b1, k_w2, k_b2 = jax.random.split(key, 5)
    lim1 = 1.0 / math.sqrt(c)
    lim2 = 1.0 / math.sqrt(hidden)

    x = jax.random.normal(k_x, x_shape, dtype=jnp.float32)
    # nn.Linear stores (out, in) and computes x @ W.T + b; pre-transpose to (in, out).
    w1 = jax.random.uniform(k_w1, (hidden, c), minval=-lim1, maxval=lim1).T
    b1 = jax.random.uniform(k_b1, (hidden,), minval=-lim1, maxval=lim1)
    w2 = jax.random.uniform(k_w2, (o, hidden), minval=-lim2, maxval=lim2).T
    b2 = jax.random.uniform(k_b2, (o,), minval=-lim2, maxval=lim2)

    params = prepare_mlp_params(w1, b1, w2, b2, hid_chunk=hid_chunk)

    x_tok = x.reshape(-1, c)
    out = mlp_pallas(x_tok, params, tm=tm).reshape(*x_shape[:-1], o)
    jax.block_until_ready(out)

    ref = mlp_reference(x_tok, w1, b1, w2, b2).reshape(*x_shape[:-1], o)
    err = float(jnp.max(jnp.abs(out - ref)))
    assert out.shape == ref.shape
    assert jnp.allclose(out, ref, atol=5e-2, rtol=5e-2), (
        f"mismatch vs reference for {x_shape}/{hidden}/{o}; max abs err = {err}")
    return err


if __name__ == "__main__":
    key = jax.random.PRNGKey(0)
    k1, k2, k3 = jax.random.split(key, 3)

    # Case 1: module-style input (B=2, N=8, C=32, hidden=64) — resident weights,
    # single-buffered constant operands.
    _run_case(k1, (2, 8, 32), hidden=64)

    # Case 2: non-aligned features/out and a token tail block (20 tokens, 16-row tile)
    # — exercises lane padding and Pallas tail masking.
    _run_case(k2, (20, 48), hidden=96, out_features=40, tm=16)

    # Case 3: hidden-dim chunking path (hidden=384 split into 3 chunks of 128)
    # — exercises the f32 accumulator + pl.when init/finalize reduction.
    _run_case(k3, (1, 24, 64), hidden=384, hid_chunk=128)

    print("KERNEL_OK")
</pallas_src>

<mosaic_0001>
module attributes {stable_mosaic.version = 11 : i64} {
  func.func @_mlp_kernel(%arg0: i32, %arg1: i32, %arg2: memref<16x128xbf16, #tpu.memory_space<vmem>>, %arg3: memref<128x128xbf16, #tpu.memory_space<vmem>>, %arg4: memref<1x128xf32, #tpu.memory_space<vmem>>, %arg5: memref<128x128xbf16, #tpu.memory_space<vmem>>, %arg6: memref<1x128xf32, #tpu.memory_space<vmem>>, %arg7: memref<16x128xf32, #tpu.memory_space<vmem>>, %arg8: memref<16x128xf32, #tpu.memory_space<vmem>>) attributes {dimension_semantics = [#tpu.dimension_semantics<parallel>, #tpu.dimension_semantics<arbitrary>], iteration_bounds = array<i64: 1, 1>, scalar_prefetch = 0 : i64, scratch_operands = 1 : i64, tpu.core_type = #tpu.core_type<tc>, window_params = [{transform_indices = @transform_0, window_bounds = array<i64: 16, 128>}, {pipeline_mode = #tpu.pipeline_mode<synchronous>, transform_indices = @transform_1, window_bounds = array<i64: 128, 128>}, {pipeline_mode = #tpu.pipeline_mode<synchronous>, transform_indices = @transform_2, window_bounds = array<i64: 1, 128>}, {pipeline_mode = #tpu.pipeline_mode<synchronous>, transform_indices = @transform_3, window_bounds = array<i64: 128, 128>}, {pipeline_mode = #tpu.pipeline_mode<synchronous>, transform_indices = @transform_4, window_bounds = array<i64: 1, 128>}, {transform_indices = @transform_5, window_bounds = array<i64: 16, 128>}]} {
    %c0_i32 = arith.constant 0 : i32
    %0 = arith.cmpi eq, %arg1, %c0_i32 : i32
    %1 = arith.extui %0 : i1 to i32
    %c0_i32_0 = arith.constant 0 : i32
    %2 = arith.cmpi ne, %1, %c0_i32_0 : i32
    scf.if %2 {
      %cst_18 = arith.constant 0.000000e+00 : f32
      %26 = vector.broadcast %cst_18 : f32 to vector<16x128xf32>
      %c0_19 = arith.constant 0 : index
      %c0_20 = arith.constant 0 : index
      %27 = vector.load %arg8[%c0_19, %c0_20] : memref<16x128xf32, #tpu.memory_space<vmem>>, vector<16x128xf32>
      tpu.vector_store %arg8[%c0_19, %c0_20], %26 {strides = array<i32>} : memref<16x128xf32, #tpu.memory_space<vmem>>, vector<16x128xf32>,
    } else {
    }
    %c0 = arith.constant 0 : index
    %c0_1 = arith.constant 0 : index
    %3 = vector.load %arg2[%c0, %c0_1] : memref<16x128xbf16, #tpu.memory_space<vmem>>, vector<16x128xbf16>
    %c0_2 = arith.constant 0 : index
    %c0_3 = arith.constant 0 : index
    %4 = vector.load %arg3[%c0_2, %c0_3] : memref<128x128xbf16, #tpu.memory_space<vmem>>, vector<128x128xbf16>
    %cst = arith.constant dense<0.000000e+00> : vector<16x128xf32>
    %5 = tpu.matmul %3, %4, %cst {dimension_numbers = #tpu.dot_dimension_numbers<[1], [0], [0], [1], [0, 0, 1, 1], [], []>} : vector<16x128xbf16>, vector<128x128xbf16>, vector<16x128xf32> -> vector<16x128xf32>
    %c0_4 = arith.constant 0 : index
    %c0_5 = arith.constant 0 : index
    %6 = vector.load %arg4[%c0_4, %c0_5] : memref<1x128xf32, #tpu.memory_space<vmem>>, vector<1x128xf32>
    %7 = vector.broadcast %6 : vector<1x128xf32> to vector<16x128xf32>
    %8 = arith.addf %5, %7 : vector<16x128xf32>
    %cst_6 = arith.constant 5.000000e-01 : f32
    %9 = vector.broadcast %cst_6 : f32 to vector<16x128xf32>
    %10 = arith.mulf %9, %8 : vector<16x128xf32>
    %cst_7 = arith.constant 0.707106769 : f32
    %11 = vector.broadcast %cst_7 : f32 to vector<16x128xf32>
    %12 = arith.mulf %8, %11 : vector<16x128xf32>
    %13 = math.erf %12 : vector<16x128xf32>
    %cst_8 = arith.constant 1.000000e+00 : f32
    %14 = vector.broadcast %cst_8 : f32 to vector<16x128xf32>
    %15 = arith.addf %14, %13 : vector<16x128xf32>
    %16 = arith.mulf %10, %15 : vector<16x128xf32>
    %c0_9 = arith.constant 0 : index
    %c0_10 = arith.constant 0 : index
    %17 = vector.load %arg8[%c0_9, %c0_10] : memref<16x128xf32, #tpu.memory_space<vmem>>, vector<16x128xf32>
    %18 = arith.truncf %16 : vector<16x128xf32> to vector<16x128xbf16>
    %c0_11 = arith.constant 0 : index
    %c0_12 = arith.constant 0 : index
    %19 = vector.load %arg5[%c0_11, %c0_12] : memref<128x128xbf16, #tpu.memory_space<vmem>>, vector<128x128xbf16>
    %cst_13 = arith.constant dense<0.000000e+00> : vector<16x128xf32>
    %20 = tpu.matmul %18, %19, %cst_13 {dimension_numbers = #tpu.dot_dimension_numbers<[1], [0], [0], [1], [0, 0, 1, 1], [], []>} : vector<16x128xbf16>, vector<128x128xbf16>, vector<16x128xf32> -> vector<16x128xf32>
    %21 = arith.addf %17, %20 : vector<16x128xf32>
    %c0_14 = arith.constant 0 : index
    %c0_15 = arith.constant 0 : index
    %22 = vector.load %arg8[%c0_14, %c0_15] : memref<16x128xf32, #tpu.memory_space<vmem>>, vector<16x128xf32>
    tpu.vector_store %arg8[%c0_14, %c0_15], %21 {strides = array<i32>} : memref<16x128xf32, #tpu.memory_space<vmem>>, vector<16x128xf32>,
    %c0_i32_16 = arith.constant 0 : i32
    %23 = arith.cmpi eq, %arg1, %c0_i32_16 : i32
    %24 = arith.extui %23 : i1 to i32
    %c0_i32_17 = arith.constant 0 : i32
    %25 = arith.cmpi ne, %24, %c0_i32_17 : i32
    scf.if %25 {
      %c0_18 = arith.constant 0 : index
      %c0_19 = arith.constant 0 : index
      %26 = vector.load %arg8[%c0_18, %c0_19] : memref<16x128xf32, #tpu.memory_space<vmem>>, vector<16x128xf32>
      %c0_20 = arith.constant 0 : index
      %c0_21 = arith.constant 0 : index
      %27 = vector.load %arg6[%c0_20, %c0_21] : memref<1x128xf32, #tpu.memory_space<vmem>>, vector<1x128xf32>
      %28 = vector.broadcast %27 : vector<1x128xf32> to vector<16x128xf32>
      %29 = arith.addf %26, %28 : vector<16x128xf32>
      %c0_22 = arith.constant 0 : index
      %c0_23 = arith.constant 0 : index
      %30 = vector.load %arg7[%c0_22, %c0_23] : memref<16x128xf32, #tpu.memory_space<vmem>>, vector<16x128xf32>
      tpu.vector_store %arg7[%c0_22, %c0_23], %29 {strides = array<i32>} : memref<16x128xf32, #tpu.memory_space<vmem>>, vector<16x128xf32>,
    } else {
    }
    return
  }
  func.func @transform_0(%arg0: i32, %arg1: i32) -> (i32, i32) {
    %c0_i32 = arith.constant 0 : i32
    %c0_i32_0 = arith.constant 0 : i32
    return %arg0, %c0_i32 : i32, i32
  }
  func.func @transform_1(%arg0: i32, %arg1: i32) -> (i32, i32) {
    %c0_i32 = arith.constant 0 : i32
    %c0_i32_0 = arith.constant 0 : i32
    return %c0_i32, %arg1 : i32, i32
  }
  func.func @transform_2(%arg0: i32, %arg1: i32) -> (i32, i32) {
    %c0_i32 = arith.constant 0 : i32
    %c0_i32_0 = arith.constant 0 : i32
    return %c0_i32, %arg1 : i32, i32
  }
  func.func @transform_3(%arg0: i32, %arg1: i32) -> (i32, i32) {
    %c0_i32 = arith.constant 0 : i32
    %c0_i32_0 = arith.constant 0 : i32
    return %arg1, %c0_i32 : i32, i32
  }
  func.func @transform_4(%arg0: i32, %arg1: i32) -> (i32, i32) {
    %c0_i32 = arith.constant 0 : i32
    %c0_i32_0 = arith.constant 0 : i32
    %c0_i32_1 = arith.constant 0 : i32
    return %c0_i32, %c0_i32_0 : i32, i32
  }
  func.func @transform_5(%arg0: i32, %arg1: i32) -> (i32, i32) {
    %c0_i32 = arith.constant 0 : i32
    %c0_i32_0 = arith.constant 0 : i32
    return %arg0, %c0_i32 : i32, i32
  }
}

module attributes {stable_mosaic.version = 11 : i64} {
  func.func @_mlp_kernel(%arg0: i32, %arg1: i32, %arg2: memref<16x128xbf16, #tpu.memory_space<vmem>>, %arg3: memref<128x128xbf16, #tpu.memory_space<vmem>>, %arg4: memref<1x128xf32, #tpu.memory_space<vmem>>, %arg5: memref<128x128xbf16, #tpu.memory_space<vmem>>, %arg6: memref<1x128xf32, #tpu.memory_space<vmem>>, %arg7: memref<16x128xf32, #tpu.memory_space<vmem>>, %arg8: memref<16x128xf32, #tpu.memory_space<vmem>>) attributes {dimension_semantics = [#tpu.dimension_semantics<parallel>, #tpu.dimension_semantics<arbitrary>], iteration_bounds = array<i64: 1, 1>, scalar_prefetch = 0 : i64, scratch_operands = 1 : i64, tpu.core_type = #tpu.core_type<tc>, window_params = [{transform_indices = @transform_0, window_bounds = array<i64: 16, 128>}, {transform_indices = @transform_1, window_bounds = array<i64: 128, 128>}, {transform_indices = @transform_2, window_bounds = array<i64: 1, 128>}, {transform_indices = @transform_3, window_bounds = array<i64: 128, 128>}, {pipeline_mode = #tpu.pipeline_mode<synchronous>, transform_indices = @transform_4, window_bounds = array<i64: 1, 128>}, {transform_indices = @transform_5, window_bounds = array<i64: 16, 128>}]} {
    %c0_i32 = arith.constant 0 : i32
    %0 = arith.cmpi eq, %arg1, %c0_i32 : i32
    %1 = arith.extui %0 : i1 to i32
    %c0_i32_0 = arith.constant 0 : i32
    %2 = arith.cmpi ne, %1, %c0_i32_0 : i32
    scf.if %2 {
      %cst_18 = arith.constant 0.000000e+00 : f32
      %26 = vector.broadcast %cst_18 : f32 to vector<16x128xf32>
      %c0_19 = arith.constant 0 : index
      %c0_20 = arith.constant 0 : index
      %27 = vector.load %arg8[%c0_19, %c0_20] : memref<16x128xf32, #tpu.memory_space<vmem>>, vector<16x128xf32>
      tpu.vector_store %arg8[%c0_19, %c0_20], %26 {strides = array<i32>} : memref<16x128xf32, #tpu.memory_space<vmem>>, vector<16x128xf32>,
    } else {
    }
    %c0 = arith.constant 0 : index
    %c0_1 = arith.constant 0 : index
    %3 = vector.load %arg2[%c0, %c0_1] : memref<16x128xbf16, #tpu.memory_space<vmem>>, vector<16x128xbf16>
    %c0_2 = arith.constant 0 : index
    %c0_3 = arith.constant 0 : index
    %4 = vector.load %arg3[%c0_2, %c0_3] : memref<128x128xbf16, #tpu.memory_space<vmem>>, vector<128x128xbf16>
    %cst = arith.constant dense<0.000000e+00> : vector<16x128xf32>
    %5 = tpu.matmul %3, %4, %cst {dimension_numbers = #tpu.dot_dimension_numbers<[1], [0], [0], [1], [0, 0, 1, 1], [], []>} : vector<16x128xbf16>, vector<128x128xbf16>, vector<16x128xf32> -> vector<16x128xf32>
    %c0_4 = arith.constant 0 : index
    %c0_5 = arith.constant 0 : index
    %6 = vector.load %arg4[%c0_4, %c0_5] : memref<1x128xf32, #tpu.memory_space<vmem>>, vector<1x128xf32>
    %7 = vector.broadcast %6 : vector<1x128xf32> to vector<16x128xf32>
    %8 = arith.addf %5, %7 : vector<16x128xf32>
    %cst_6 = arith.constant 5.000000e-01 : f32
    %9 = vector.broadcast %cst_6 : f32 to vector<16x128xf32>
    %10 = arith.mulf %9, %8 : vector<16x128xf32>
    %cst_7 = arith.constant 0.707106769 : f32
    %11 = vector.broadcast %cst_7 : f32 to vector<16x128xf32>
    %12 = arith.mulf %8, %11 : vector<16x128xf32>
    %13 = math.erf %12 : vector<16x128xf32>
    %cst_8 = arith.constant 1.000000e+00 : f32
    %14 = vector.broadcast %cst_8 : f32 to vector<16x128xf32>
    %15 = arith.addf %14, %13 : vector<16x128xf32>
    %16 = arith.mulf %10, %15 : vector<16x128xf32>
    %c0_9 = arith.constant 0 : index
    %c0_10 = arith.constant 0 : index
    %17 = vector.load %arg8[%c0_9, %c0_10] : memref<16x128xf32, #tpu.memory_space<vmem>>, vector<16x128xf32>
    %18 = arith.truncf %16 : vector<16x128xf32> to vector<16x128xbf16>
    %c0_11 = arith.constant 0 : index
    %c0_12 = arith.constant 0 : index
    %19 = vector.load %arg5[%c0_11, %c0_12] : memref<128x128xbf16, #tpu.memory_space<vmem>>, vector<128x128xbf16>
    %cst_13 = arith.constant dense<0.000000e+00> : vector<16x128xf32>
    %20 = tpu.matmul %18, %19, %cst_13 {dimension_numbers = #tpu.dot_dimension_numbers<[1], [0], [0], [1], [0, 0, 1, 1], [], []>} : vector<16x128xbf16>, vector<128x128xbf16>, vector<16x128xf32> -> vector<16x128xf32>
    %21 = arith.addf %17, %20 : vector<16x128xf32>
    %c0_14 = arith.constant 0 : index
    %c0_15 = arith.constant 0 : index
    %22 = vector.load %arg8[%c0_14, %c0_15] : memref<16x128xf32, #tpu.memory_space<vmem>>, vector<16x128xf32>
    tpu.vector_store %arg8[%c0_14, %c0_15], %21 {strides = array<i32>} : memref<16x128xf32, #tpu.memory_space<vmem>>, vector<16x128xf32>,
    %c0_i32_16 = arith.constant 0 : i32
    %23 = arith.cmpi eq, %arg1, %c0_i32_16 : i32
    %24 = arith.extui %23 : i1 to i32
    %c0_i32_17 = arith.constant 0 : i32
    %25 = arith.cmpi ne, %24, %c0_i32_17 : i32
    scf.if %25 {
      %c0_18 = arith.constant 0 : index
      %c0_19 = arith.constant 0 : index
      %26 = vector.load %arg8[%c0_18, %c0_19] : memref<16x128xf32, #tpu.memory_space<vmem>>, vector<16x128xf32>
      %c0_20 = arith.constant 0 : index
      %c0_21 = arith.constant 0 : index
      %27 = vector.load %arg6[%c0_20, %c0_21] : memref<1x128xf32, #tpu.memory_space<vmem>>, vector<1x128xf32>
      %28 = vector.broadcast %27 : vector<1x128xf32> to vector<16x128xf32>
      %29 = arith.addf %26, %28 : vector<16x128xf32>
      %c0_22 = arith.constant 0 : index
      %c0_23 = arith.constant 0 : index
      %30 = vector.load %arg7[%c0_22, %c0_23] : memref<16x128xf32, #tpu.memory_space<vmem>>, vector<16x128xf32>
      tpu.vector_store %arg7[%c0_22, %c0_23], %29 {strides = array<i32>} : memref<16x128xf32, #tpu.memory_space<vmem>>, vector<16x128xf32>,
    } else {
    }
    return
  }
  func.func @transform_0(%arg0: i32, %arg1: i32) -> (i32, i32) {
    %c0_i32 = arith.constant 0 : i32
    %c0_i32_0 = arith.constant 0 : i32
    return %arg0, %c0_i32 : i32, i32
  }
  func.func @transform_1(%arg0: i32, %arg1: i32) -> (i32, i32) {
    %c0_i32 = arith.constant 0 : i32
    %c0_i32_0 = arith.constant 0 : i32
    return %c0_i32, %arg1 : i32, i32
  }
  func.func @transform_2(%arg0: i32, %arg1: i32) -> (i32, i32) {
    %c0_i32 = arith.constant 0 : i32
    %c0_i32_0 = arith.constant 0 : i32
    return %c0_i32, %arg1 : i32, i32
  }
  func.func @transform_3(%arg0: i32, %arg1: i32) -> (i32, i32) {
    %c0_i32 = arith.constant 0 : i32
    %c0_i32_0 = arith.constant 0 : i32
    return %arg1, %c0_i32 : i32, i32
  }
  func.func @transform_4(%arg0: i32, %arg1: i32) -> (i32, i32) {
    %c0_i32 = arith.constant 0 : i32
    %c0_i32_0 = arith.constant 0 : i32
    %c0_i32_1 = arith.constant 0 : i32
    return %c0_i32, %c0_i32_0 : i32, i32
  }
  func.func @transform_5(%arg0: i32, %arg1: i32) -> (i32, i32) {
    %c0_i32 = arith.constant 0 : i32
    %c0_i32_0 = arith.constant 0 : i32
    return %arg0, %c0_i32 : i32, i32
  }
}

</mosaic_0001>

<llo_original>
// kernel: _mlp_pallas_impl.1
$region0: #{_mlp_pallas_impl.1}
  #allocation0 [shape = 'u32[]', space=smem, size = 0x4, offset = 0x4, fixed_abs, tag = 'smem constant byte address 0x4 - core index']
  #allocation1 [shape = 'u32[72,128]{1,0:T(1,128)}', space=vmem, size = 0x9000, scoped, tag = 'internal scratch']
  #allocation2 [shape = 'f32[16,128]{1,0:T(8,128)}', space=vmem, size = 0x2000, scoped, tag = 'scratch operand']
  %s0 = inlined_call_operand.vmem [shape: bf16[16,128], index: 0, kind: input, shape index: {}]
  %s1 = inlined_call_operand.hbm [shape: bf16[128,128], index: 1, kind: input, shape index: {}]
  %s2 = inlined_call_operand.vmem [shape: f32[1,128], index: 2, kind: input, shape index: {}]
  %s3 = inlined_call_operand.hbm [shape: bf16[128,128], index: 3, kind: input, shape index: {}]
  %s4 = inlined_call_operand.vmem [shape: f32[1,128], index: 4, kind: input, shape index: {}]
  %s5 = inlined_call_operand.hbm [shape: f32[16,128], index: 5, kind: output, shape index: {}]
  %s6 = sld [smem:[#allocation0]]
  $region46: #{_mlp_pallas_impl.1} parent=0
    _
  %s8 = ssub.s32 1, %s6
  %s9 = scalar_select 0, %s8, %s6
  $region1: #{_mlp_pallas_impl.1} parent=0
    #allocation3 [shape = 'u8[32768]{0}', space=vmem, size = 0x8000, scoped, tag = 'input window, operand 1, single buffered']
    #allocation4 [shape = 's32[1]{0}', space=sflag, size = 0x4, scoped, tag = 'scoped memory for _mlp_pallas_impl.1']
    #allocation5 [shape = 's32[1]{0}', space=sflag, size = 0x4, scoped, tag = 'scoped memory for _mlp_pallas_impl.1']
    #allocation6 [shape = 'u8[32768]{0}', space=vmem, size = 0x8000, scoped, tag = 'input window, operand 3, single buffered']
    #allocation7 [shape = 's32[1]{0}', space=sflag, size = 0x4, scoped, tag = 'scoped memory for _mlp_pallas_impl.1']
    #allocation8 [shape = 'u8[8192]{0}', space=vmem, size = 0x2000, scoped, tag = 'output window, operand 0, single buffered']
    %10 = vsyncpa [#allocation4], 0
    %11 = vsyncpa [#allocation7], 0
    %12 = vsyncpa [#allocation5], 0
    // Predicated region
    $region2: #{_mlp_pallas_impl.1} parent=1 // pred_check
      _
    $region3: #{_mlp_pallas_impl.1} parent=1 // pred_check_branch
      %14 = sbr.rel (0) target = $region5
    $region4: #{_mlp_pallas_impl.1} parent=1 // pred_region
      _
    $region5: #{_mlp_pallas_impl.1} parent=1 // pred_fallthru
      _
    // Predicated region
    $region6: #{_mlp_pallas_impl.1} parent=1 // pred_check
      _
    $region7: #{_mlp_pallas_impl.1} parent=1 // pred_check_branch
      %16 = sbr.rel (0) target = $region9
    $region8: #{_mlp_pallas_impl.1} parent=1 // pred_region
      %18 = vsyncadd [#allocation4], 0
      %s19 = sshll.u32 %s1, 4
      %s20 = int_to_ptr.hbm [resolvable:$true] %s19
      %s21 = sshll.u32 [#allocation3], 4
      %s22 = int_to_ptr.vmem [resolvable:$true] %s21
      %27 = dma.hbm_to_vmem [thread:$0]  %s20, 1024, %s22, [#allocation4], 64, 64, 4
    $region9: #{_mlp_pallas_impl.1} parent=1 // pred_fallthru
      _
    // Predicated region
    $region10: #{_mlp_pallas_impl.1} parent=1 // pred_check
      _
    $region11: #{_mlp_pallas_impl.1} parent=1 // pred_check_branch
      %29 = sbr.rel (0) target = $region13
    $region12: #{_mlp_pallas_impl.1} parent=1 // pred_region
      _
    $region13: #{_mlp_pallas_impl.1} parent=1 // pred_fallthru
      _
    // Predicated region
    $region14: #{_mlp_pallas_impl.1} parent=1 // pred_check
      _
    $region15: #{_mlp_pallas_impl.1} parent=1 // pred_check_branch
      %31 = sbr.rel (0) target = $region17
    $region16: #{_mlp_pallas_impl.1} parent=1 // pred_region
      %33 = vsyncadd [#allocation7], 0
      %s34 = sshll.u32 %s3, 4
      %s35 = int_to_ptr.hbm [resolvable:$true] %s34
      %s36 = sshll.u32 [#allocation6], 4
      %s37 = int_to_ptr.vmem [resolvable:$true] %s36
      %42 = dma.hbm_to_vmem [thread:$0]  %s35, 1024, %s37, [#allocation7], 64, 64, 4
    $region17: #{_mlp_pallas_impl.1} parent=1 // pred_fallthru
      _
    // Predicated region
    $region18: #{_mlp_pallas_impl.1} parent=1 // pred_check
      _
    $region19: #{_mlp_pallas_impl.1} parent=1 // pred_check_branch
      %44 = sbr.rel (0) target = $region21
    $region20: #{_mlp_pallas_impl.1} parent=1 // pred_region
      _
    $region21: #{_mlp_pallas_impl.1} parent=1 // pred_fallthru
      _
    // Predicated region
    $region22: #{_mlp_pallas_impl.1} parent=1 // pred_check
      _
    $region23: #{_mlp_pallas_impl.1} parent=1 // pred_check_branch
      %46 = sbr.rel (0) target = $region25
    $region24: #{_mlp_pallas_impl.1} parent=1 // pred_region
      %48 = dma.done [#allocation4], 1024
    $region25: #{_mlp_pallas_impl.1} parent=1 // pred_fallthru
      _
    // Predicated region
    $region26: #{_mlp_pallas_impl.1} parent=1 // pred_check
      _
    $region27: #{_mlp_pallas_impl.1} parent=1 // pred_check_branch
      %50 = sbr.rel (0) target = $region29
    $region28: #{_mlp_pallas_impl.1} parent=1 // pred_region
      %52 = dma.done [#allocation7], 1024
    $region29: #{_mlp_pallas_impl.1} parent=1 // pred_fallthru
      _
    %p53 = scmp.eq.s32.totalorder 0, 0
    // Predicated region
    $region30: #{_mlp_pallas_impl.1} parent=1 // pred_check
      %p54 = pneg %p53
    $region31: #{_mlp_pallas_impl.1} parent=1 // pred_check_branch
      %56 = sbr.rel (%p54) target = $region33
    $region32: #{_mlp_pallas_impl.1} parent=1 // pred_region
      %57 = vst [vmem:[#allocation2] sm:$0xff] 0.0
      %58 = vst [vmem:[#allocation2 + $0x8] sm:$0xff] 0.0
    $region33: #{_mlp_pallas_impl.1} parent=1 // pred_fallthru
      _
    %v59 = vld [vmem:[%s0] sm:$0xf]
    %v60 = vld [vmem:[%s0 + $0x4] sm:$0xf]
    %v61 = vld [vmem:[#allocation3] sm:$0xf]
    %v62 = vld [vmem:[#allocation3 + $0x4] sm:$0xf]
    %v63 = vld [vmem:[#allocation3 + $0x8] sm:$0xf]
    %v64 = vld [vmem:[#allocation3 + $0xc] sm:$0xf]
    %v65 = vld [vmem:[#allocation3 + $0x10] sm:$0xf]
    %v66 = vld [vmem:[#allocation3 + $0x14] sm:$0xf]
    %v67 = vld [vmem:[#allocation3 + $0x18] sm:$0xf]
    %v68 = vld [vmem:[#allocation3 + $0x1c] sm:$0xf]
    %v69 = vld [vmem:[#allocation3 + $0x20] sm:$0xf]
    %v70 = vld [vmem:[#allocation3 + $0x24] sm:$0xf]
    %v71 = vld [vmem:[#allocation3 + $0x28] sm:$0xf]
    %v72 = vld [vmem:[#allocation3 + $0x2c] sm:$0xf]
    %v73 = vld [vmem:[#allocation3 + $0x30] sm:$0xf]
    %v74 = vld [vmem:[#allocation3 + $0x34] sm:$0xf]
    %v75 = vld [vmem:[#allocation3 + $0x38] sm:$0xf]
    %v76 = vld [vmem:[#allocation3 + $0x3c] sm:$0xf]
    %v77 = vld [vmem:[%s2] sm:$0x1]
    %v79 = vperm.slane %v77, 0
    %v83 = vunpack.c.l.b16 %v59
    %v84 = vunpack.c.l.b16 %v60
    %v85 = vpack.c.b16 %v84, %v83
    %v103 = vunpack.c.l.b16 %v61
    %v104 = vunpack.c.l.b16 %v62
    %v105 = vunpack.c.l.b16 %v63
    %v106 = vunpack.c.l.b16 %v64
    %v107 = vunpack.c.l.b16 %v65
    %v108 = vunpack.c.l.b16 %v66
    %v109 = vunpack.c.l.b16 %v67
    %v110 = vunpack.c.l.b16 %v68
    %v111 = vunpack.c.l.b16 %v69
    %v112 = vunpack.c.l.b16 %v70
    %v113 = vunpack.c.l.b16 %v71
    %v114 = vunpack.c.l.b16 %v72
    %v115 = vunpack.c.l.b16 %v73
    %v116 = vunpack.c.l.b16 %v74
    %v117 = vunpack.c.l.b16 %v75
    %v118 = vunpack.c.l.b16 %v76
    %v119 = vpack.c.b16 %v104, %v103
    %v120 = vpack.c.b16 %v106, %v105
    %v121 = vpack.c.b16 %v108, %v107
    %v122 = vpack.c.b16 %v110, %v109
    %v123 = vpack.c.b16 %v112, %v111
    %v124 = vpack.c.b16 %v114, %v113
    %v125 = vpack.c.b16 %v116, %v115
    %v126 = vpack.c.b16 %v118, %v117
    %135 = vmatpush.bf16.msra.mxu0 %v126
    %136 = vmatpush.bf16.msra.mxu0 %v125
    %137 = vmatpush.bf16.msra.mxu0 %v124
    %138 = vmatpush.bf16.msra.mxu0 %v123
    %139 = vmatpush.bf16.msra.mxu0 %v122
    %140 = vmatpush.bf16.msra.mxu0 %v121
    %141 = vmatpush.bf16.msra.mxu0 %v120
    %142 = vmatpush.bf16.msra.mxu0 %v119
    %143 = vmatmul.bf16.gmra.mxu0 %v85
    %v144 = vpop.f32.mrf.mxu0
    %v145 = vadd.f32 %v79, %v144
    %v146 = vpop.f32.mrf.mxu0
    %v147 = vadd.f32 %v79, %v146
    %148 = vdwg.mxu0
    %v149 = vmul.f32 %v145, 0.5
    %v150 = vmul.f32 %v147, 0.5
    %v151 = vmul.f32 %v145, 0.70710677
    %v152 = vmul.f32 %v147, 0.70710677
    %v153 = vmul.f32 %v151, %v151
    %v154 = vmin.f32 16.0, %v153
    %v155 = vmul.f32 %v154, 2.1237322e-06
    %v156 = vadd.f32 %v155, 0.00028619796
    %v157 = vmul.f32 %v154, %v156
    %v158 = vadd.f32 %v157, 0.0036580483
    %v159 = vmul.f32 %v154, %v158
    %v160 = vadd.f32 %v159, 0.05243302
    %v161 = vmul.f32 %v154, %v160
    %v162 = vadd.f32 %v161, 0.18741608
    %v163 = vmul.f32 %v154, %v162
    %v164 = vadd.f32 %v163, 1.1283791
    %v165 = vmul.f32 %v151, %v164
    %v166 = vmul.f32 %v154, 3.8918573e-05
    %v167 = vadd.f32 %v166, 0.001143296
    %v168 = vmul.f32 %v154, %v167
    %v169 = vadd.f32 %v168, 0.014752088
    %v170 = vmul.f32 %v154, %v169
    %v171 = vadd.f32 %v170, 0.112945676
    %v172 = vmul.f32 %v154, %v171
    %v173 = vadd.f32 %v172, 0.4994258
    %v174 = vmul.f32 %v154, %v173
    %v175 = vadd.f32 %v174, 1.0
    %v176 = vrcp.pop %v175
    %v177 = vmul.f32 %v175, %v176
    %v178 = vsub.f32 1.0, %v177
    %v179 = vmul.f32 %v176, %v178
    %v180 = vadd.f32 %v176, %v179
    %vm181 = vweird.f32 %v175
    %vm182 = vweird.f32 %v176
    %vm183 = vmor %vm181, %vm182
    %v184 = vsel %vm183, %v176, %v180
    %v185 = vand.u32 2147483647, %v175
    %vm186 = vcmp.eq.f32.partialorder %v185, 8.507059e+37
    %v187 = vand.u32 %v175, 2147483648
    %v188 = vor.u32 1.1754944e-38, %v187
    %v189 = vsel %vm186, %v188, %v184
    %v190 = vmul.f32 %v165, %v189
    %v191 = vmin.f32 %v190, 1.0
    %v192 = vmax.f32 %v191, -1.0
    %v193 = vmul.f32 %v152, %v152
    %v194 = vmin.f32 16.0, %v193
    %v195 = vmul.f32 %v194, 2.1237322e-06
    %v196 = vadd.f32 %v195, 0.00028619796
    %v197 = vmul.f32 %v194, %v196
    %v198 = vadd.f32 %v197, 0.0036580483
    %v199 = vmul.f32 %v194, %v198
    %v200 = vadd.f32 %v199, 0.05243302
    %v201 = vmul.f32 %v194, %v200
    %v202 = vadd.f32 %v201, 0.18741608
    %v203 = vmul.f32 %v194, %v202
    %v204 = vadd.f32 %v203, 1.1283791
    %v205 = vmul.f32 %v152, %v204
    %v206 = vmul.f32 %v194, 3.8918573e-05
    %v207 = vadd.f32 %v206, 0.001143296
    %v208 = vmul.f32 %v194, %v207
    %v209 = vadd.f32 %v208, 0.014752088
    %v210 = vmul.f32 %v194, %v209
    %v211 = vadd.f32 %v210, 0.112945676
    %v212 = vmul.f32 %v194, %v211
    %v213 = vadd.f32 %v212, 0.4994258
    %v214 = vmul.f32 %v194, %v213
    %v215 = vadd.f32 %v214, 1.0
    %v216 = vrcp.pop %v215
    %v217 = vmul.f32 %v215, %v216
    %v218 = vsub.f32 1.0, %v217
    %v219 = vmul.f32 %v216, %v218
    %v220 = vadd.f32 %v216, %v219
    %vm221 = vweird.f32 %v215
    %vm222 = vweird.f32 %v216
    %vm223 = vmor %vm221, %vm222
    %v224 = vsel %vm223, %v216, %v220
    %v225 = vand.u32 2147483647, %v215
    %vm226 = vcmp.eq.f32.partialorder %v225, 8.507059e+37
    %v227 = vand.u32 %v215, 2147483648
    %v228 = vor.u32 1.1754944e-38, %v227
    %v229 = vsel %vm226, %v228, %v224
    %v230 = vmul.f32 %v205, %v229
    %v231 = vmin.f32 %v230, 1.0
    %v232 = vmax.f32 %v231, -1.0
    %v233 = vadd.f32 %v192, 1.0
    %v234 = vadd.f32 %v232, 1.0
    %v235 = vmul.f32 %v149, %v233
    %v236 = vmul.f32 %v150, %v234
    %v237 = vld [vmem:[#allocation2] sm:$0xff]
    %v238 = vld [vmem:[#allocation2 + $0x8] sm:$0xff]
    %v239 = vpack.c.bf16 %v236, %v235
    %v240 = vld [vmem:[#allocation6] sm:$0xf]
    %v241 = vld [vmem:[#allocation6 + $0x4] sm:$0xf]
    %v242 = vld [vmem:[#allocation6 + $0x8] sm:$0xf]
    %v243 = vld [vmem:[#allocation6 + $0xc] sm:$0xf]
    %v244 = vld [vmem:[#allocation6 + $0x10] sm:$0xf]
    %v245 = vld [vmem:[#allocation6 + $0x14] sm:$0xf]
    %v246 = vld [vmem:[#allocation6 + $0x18] sm:$0xf]
    %v247 = vld [vmem:[#allocation6 + $0x1c] sm:$0xf]
    %v248 = vld [vmem:[#allocation6 + $0x20] sm:$0xf]
    %v249 = vld [vmem:[#allocation6 + $0x24] sm:$0xf]
    %v250 = vld [vmem:[#allocation6 + $0x28] sm:$0xf]
    %v251 = vld [vmem:[#allocation6 + $0x2c] sm:$0xf]
    %v252 = vld [vmem:[#allocation6 + $0x30] sm:$0xf]
    %v253 = vld [vmem:[#allocation6 + $0x34] sm:$0xf]
    %v254 = vld [vmem:[#allocation6 + $0x38] sm:$0xf]
    %v255 = vld [vmem:[#allocation6 + $0x3c] sm:$0xf]
    %v272 = vunpack.c.l.b16 %v240
    %v273 = vunpack.c.l.b16 %v241
    %v274 = vunpack.c.l.b16 %v242
    %v275 = vunpack.c.l.b16 %v243
    %v276 = vunpack.c.l.b16 %v244
    %v277 = vunpack.c.l.b16 %v245
    %v278 = vunpack.c.l.b16 %v246
    %v279 = vunpack.c.l.b16 %v247
    %v280 = vunpack.c.l.b16 %v248
    %v281 = vunpack.c.l.b16 %v249
    %v282 = vunpack.c.l.b16 %v250
    %v283 = vunpack.c.l.b16 %v251
    %v284 = vunpack.c.l.b16 %v252
    %v285 = vunpack.c.l.b16 %v253
    %v286 = vunpack.c.l.b16 %v254
    %v287 = vunpack.c.l.b16 %v255
    %v288 = vpack.c.b16 %v273, %v272
    %v289 = vpack.c.b16 %v275, %v274
    %v290 = vpack.c.b16 %v277, %v276
    %v291 = vpack.c.b16 %v279, %v278
    %v292 = vpack.c.b16 %v281, %v280
    %v293 = vpack.c.b16 %v283, %v282
    %v294 = vpack.c.b16 %v285, %v284
    %v295 = vpack.c.b16 %v287, %v286
    %304 = vmatpush.bf16.msra.mxu0 %v295
    %305 = vmatpush.bf16.msra.mxu0 %v294
    %306 = vmatpush.bf16.msra.mxu0 %v293
    %307 = vmatpush.bf16.msra.mxu0 %v292
    %308 = vmatpush.bf16.msra.mxu0 %v291
    %309 = vmatpush.bf16.msra.mxu0 %v290
    %310 = vmatpush.bf16.msra.mxu0 %v289
    %311 = vmatpush.bf16.msra.mxu0 %v288
    %312 = vmatmul.bf16.gmra.mxu0 %v239
    %v313 = vpop.f32.mrf.mxu0
    %v314 = vadd.f32 0.0, %v313
    %v315 = vpop.f32.mrf.mxu0
    %v316 = vadd.f32 0.0, %v315
    %317 = vdwg.mxu0
    %v318 = vadd.f32 %v237, %v314
    %v319 = vadd.f32 %v238, %v316
    %320 = vst [vmem:[#allocation2] sm:$0xff] %v318
    %321 = vst [vmem:[#allocation2 + $0x8] sm:$0xff] %v319
    // Predicated region
    $region34: #{_mlp_pallas_impl.1} parent=1 // pred_check
      %p322 = pneg %p53
    $region35: #{_mlp_pallas_impl.1} parent=1 // pred_check_branch
      %324 = sbr.rel (%p322) target = $region37
    $region36: #{_mlp_pallas_impl.1} parent=1 // pred_region
      %v325 = vld [vmem:[#allocation2] sm:$0xff]
      %v326 = vld [vmem:[#allocation2 + $0x8] sm:$0xff]
      %v327 = vld [vmem:[%s4] sm:$0x1]
      %v329 = vperm.slane %v327, 0
      %v331 = vadd.f32 %v325, %v329
      %v332 = vadd.f32 %v326, %v329
      %333 = vst [vmem:[#allocation8] sm:$0xff] %v331
      %334 = vst [vmem:[#allocation8 + $0x8] sm:$0xff] %v332
    $region37: #{_mlp_pallas_impl.1} parent=1 // pred_fallthru
      _
    // Predicated region
    $region38: #{_mlp_pallas_impl.1} parent=1 // pred_check
      _
    $region39: #{_mlp_pallas_impl.1} parent=1 // pred_check_branch
      %336 = sbr.rel (0) target = $region41
    $region40: #{_mlp_pallas_impl.1} parent=1 // pred_region
      %338 = vsyncadd [#allocation5], 0
      %s339 = sshll.u32 [#allocation8], 4
      %s340 = int_to_ptr.vmem [resolvable:$true] %s339
      %s341 = sshll.u32 %s5, 4
      %s342 = int_to_ptr.hbm [resolvable:$true] %s341
      %347 = dma.vmem_to_hbm [thread:$0]  %s340, 256, %s342, [#allocation5], 128, 128, 8
    $region41: #{_mlp_pallas_impl.1} parent=1 // pred_fallthru
      _
    // Predicated region
    $region42: #{_mlp_pallas_impl.1} parent=1 // pred_check
      _
    $region43: #{_mlp_pallas_impl.1} parent=1 // pred_check_branch
      %349 = sbr.rel (0) target = $region45
    $region44: #{_mlp_pallas_impl.1} parent=1 // pred_region
      %351 = dma.done [#allocation5], 256
    $region45: #{_mlp_pallas_impl.1} parent=1 // pred_fallthru
      _
    %352 = vsyncpa [#allocation4], 1
    %353 = vsyncpa [#allocation7], 1
    %354 = vsyncpa [#allocation5], 1

// kernel: _mlp_pallas_impl.1
$region0: #{_mlp_pallas_impl.1}
  #allocation0 [shape = 'u32[]', space=smem, size = 0x4, offset = 0x4, fixed_abs, tag = 'smem constant byte address 0x4 - core index']
  #allocation1 [shape = 'u32[72,128]{1,0:T(1,128)}', space=vmem, size = 0x9000, scoped, tag = 'internal scratch']
  #allocation2 [shape = 'f32[16,128]{1,0:T(8,128)}', space=vmem, size = 0x2000, scoped, tag = 'scratch operand']
  %s0 = inlined_call_operand.vmem [shape: bf16[16,128], index: 0, kind: input, shape index: {}]
  %s1 = inlined_call_operand.hbm [shape: bf16[128,128], index: 1, kind: input, shape index: {}]
  %s2 = inlined_call_operand.vmem [shape: f32[1,128], index: 2, kind: input, shape index: {}]
  %s3 = inlined_call_operand.hbm [shape: bf16[128,128], index: 3, kind: input, shape index: {}]
  %s4 = inlined_call_operand.vmem [shape: f32[1,128], index: 4, kind: input, shape index: {}]
  %s5 = inlined_call_operand.hbm [shape: f32[16,128], index: 5, kind: output, shape index: {}]
  %s6 = sld [smem:[#allocation0]]
  $region46: #{_mlp_pallas_impl.1} parent=0
    _
  %s8 = ssub.s32 1, %s6
  %s9 = scalar_select 0, %s8, %s6
  $region1: #{_mlp_pallas_impl.1} parent=0
    #allocation3 [shape = 'u8[32768]{0}', space=vmem, size = 0x8000, scoped, tag = 'input window, operand 1, single buffered']
    #allocation4 [shape = 's32[1]{0}', space=sflag, size = 0x4, scoped, tag = 'scoped memory for _mlp_pallas_impl.1']
    #allocation5 [shape = 's32[1]{0}', space=sflag, size = 0x4, scoped, tag = 'scoped memory for _mlp_pallas_impl.1']
    #allocation6 [shape = 'u8[32768]{0}', space=vmem, size = 0x8000, scoped, tag = 'input window, operand 3, single buffered']
    #allocation7 [shape = 's32[1]{0}', space=sflag, size = 0x4, scoped, tag = 'scoped memory for _mlp_pallas_impl.1']
    #allocation8 [shape = 'u8[8192]{0}', space=vmem, size = 0x2000, scoped, tag = 'output window, operand 0, single buffered']
    %10 = vsyncpa [#allocation4], 0
    %11 = vsyncpa [#allocation7], 0
    %12 = vsyncpa [#allocation5], 0
    // Predicated region
    $region2: #{_mlp_pallas_impl.1} parent=1 // pred_check
      _
    $region3: #{_mlp_pallas_impl.1} parent=1 // pred_check_branch
      %14 = sbr.rel (0) target = $region5
    $region4: #{_mlp_pallas_impl.1} parent=1 // pred_region
      _
    $region5: #{_mlp_pallas_impl.1} parent=1 // pred_fallthru
      _
    // Predicated region
    $region6: #{_mlp_pallas_impl.1} parent=1 // pred_check
      _
    $region7: #{_mlp_pallas_impl.1} parent=1 // pred_check_branch
      %16 = sbr.rel (0) target = $region9
    $region8: #{_mlp_pallas_impl.1} parent=1 // pred_region
      %18 = vsyncadd [#allocation4], 0
      %s19 = sshll.u32 %s1, 4
      %s20 = int_to_ptr.hbm [resolvable:$true] %s19
      %s21 = sshll.u32 [#allocation3], 4
      %s22 = int_to_ptr.vmem [resolvable:$true] %s21
      %27 = dma.hbm_to_vmem [thread:$0]  %s20, 1024, %s22, [#allocation4], 64, 64, 4
    $region9: #{_mlp_pallas_impl.1} parent=1 // pred_fallthru
      _
    // Predicated region
    $region10: #{_mlp_pallas_impl.1} parent=1 // pred_check
      _
    $region11: #{_mlp_pallas_impl.1} parent=1 // pred_check_branch
      %29 = sbr.rel (0) target = $region13
    $region12: #{_mlp_pallas_impl.1} parent=1 // pred_region
      _
    $region13: #{_mlp_pallas_impl.1} parent=1 // pred_fallthru
      _
    // Predicated region
    $region14: #{_mlp_pallas_impl.1} parent=1 // pred_check
      _
    $region15: #{_mlp_pallas_impl.1} parent=1 // pred_check_branch
      %31 = sbr.rel (0) target = $region17
    $region16: #{_mlp_pallas_impl.1} parent=1 // pred_region
      %33 = vsyncadd [#allocation7], 0
      %s34 = sshll.u32 %s3, 4
      %s35 = int_to_ptr.hbm [resolvable:$true] %s34
      %s36 = sshll.u32 [#allocation6], 4
      %s37 = int_to_ptr.vmem [resolvable:$true] %s36
      %42 = dma.hbm_to_vmem [thread:$0]  %s35, 1024, %s37, [#allocation7], 64, 64, 4
    $region17: #{_mlp_pallas_impl.1} parent=1 // pred_fallthru
      _
    // Predicated region
    $region18: #{_mlp_pallas_impl.1} parent=1 // pred_check
      _
    $region19: #{_mlp_pallas_impl.1} parent=1 // pred_check_branch
      %44 = sbr.rel (0) target = $region21
    $region20: #{_mlp_pallas_impl.1} parent=1 // pred_region
      _
    $region21: #{_mlp_pallas_impl.1} parent=1 // pred_fallthru
      _
    // Predicated region
    $region22: #{_mlp_pallas_impl.1} parent=1 // pred_check
      _
    $region23: #{_mlp_pallas_impl.1} parent=1 // pred_check_branch
      %46 = sbr.rel (0) target = $region25
    $region24: #{_mlp_pallas_impl.1} parent=1 // pred_region
      %48 = dma.done [#allocation4], 1024
    $region25: #{_mlp_pallas_impl.1} parent=1 // pred_fallthru
      _
    // Predicated region
    $region26: #{_mlp_pallas_impl.1} parent=1 // pred_check
      _
    $region27: #{_mlp_pallas_impl.1} parent=1 // pred_check_branch
      %50 = sbr.rel (0) target = $region29
    $region28: #{_mlp_pallas_impl.1} parent=1 // pred_region
      %52 = dma.done [#allocation7], 1024
    $region29: #{_mlp_pallas_impl.1} parent=1 // pred_fallthru
      _
    %p53 = scmp.eq.s32.totalorder 0, 0
    // Predicated region
    $region30: #{_mlp_pallas_impl.1} parent=1 // pred_check
      %p54 = pneg %p53
    $region31: #{_mlp_pallas_impl.1} parent=1 // pred_check_branch
      %56 = sbr.rel (%p54) target = $region33
    $region32: #{_mlp_pallas_impl.1} parent=1 // pred_region
      %57 = vst [vmem:[#allocation2] sm:$0xff] 0.0
      %58 = vst [vmem:[#allocation2 + $0x8] sm:$0xff] 0.0
    $region33: #{_mlp_pallas_impl.1} parent=1 // pred_fallthru
      _
    %v59 = vld [vmem:[%s0] sm:$0xf]
    %v60 = vld [vmem:[%s0 + $0x4] sm:$0xf]
    %v61 = vld [vmem:[#allocation3] sm:$0xf]
    %v62 = vld [vmem:[#allocation3 + $0x4] sm:$0xf]
    %v63 = vld [vmem:[#allocation3 + $0x8] sm:$0xf]
    %v64 = vld [vmem:[#allocation3 + $0xc] sm:$0xf]
    %v65 = vld [vmem:[#allocation3 + $0x10] sm:$0xf]
    %v66 = vld [vmem:[#allocation3 + $0x14] sm:$0xf]
    %v67 = vld [vmem:[#allocation3 + $0x18] sm:$0xf]
    %v68 = vld [vmem:[#allocation3 + $0x1c] sm:$0xf]
    %v69 = vld [vmem:[#allocation3 + $0x20] sm:$0xf]
    %v70 = vld [vmem:[#allocation3 + $0x24] sm:$0xf]
    %v71 = vld [vmem:[#allocation3 + $0x28] sm:$0xf]
    %v72 = vld [vmem:[#allocation3 + $0x2c] sm:$0xf]
    %v73 = vld [vmem:[#allocation3 + $0x30] sm:$0xf]
    %v74 = vld [vmem:[#allocation3 + $0x34] sm:$0xf]
    %v75 = vld [vmem:[#allocation3 + $0x38] sm:$0xf]
    %v76 = vld [vmem:[#allocation3 + $0x3c] sm:$0xf]
    %v77 = vld [vmem:[%s2] sm:$0x1]
    %v79 = vperm.slane %v77, 0
    %v83 = vunpack.c.l.b16 %v59
    %v84 = vunpack.c.l.b16 %v60
    %v85 = vpack.c.b16 %v84, %v83
    %v103 = vunpack.c.l.b16 %v61
    %v104 = vunpack.c.l.b16 %v62
    %v105 = vunpack.c.l.b16 %v63
    %v106 = vunpack.c.l.b16 %v64
    %v107 = vunpack.c.l.b16 %v65
    %v108 = vunpack.c.l.b16 %v66
    %v109 = vunpack.c.l.b16 %v67
    %v110 = vunpack.c.l.b16 %v68
    %v111 = vunpack.c.l.b16 %v69
    %v112 = vunpack.c.l.b16 %v70
    %v113 = vunpack.c.l.b16 %v71
    %v114 = vunpack.c.l.b16 %v72
    %v115 = vunpack.c.l.b16 %v73
    %v116 = vunpack.c.l.b16 %v74
    %v117 = vunpack.c.l.b16 %v75
    %v118 = vunpack.c.l.b16 %v76
    %v119 = vpack.c.b16 %v104, %v103
    %v120 = vpack.c.b16 %v106, %v105
    %v121 = vpack.c.b16 %v108, %v107
    %v122 = vpack.c.b16 %v110, %v109
    %v123 = vpack.c.b16 %v112, %v111
    %v124 = vpack.c.b16 %v114, %v113
    %v125 = vpack.c.b16 %v116, %v115
    %v126 = vpack.c.b16 %v118, %v117
    %135 = vmatpush.bf16.msra.mxu0 %v126
    %136 = vmatpush.bf16.msra.mxu0 %v125
    %137 = vmatpush.bf16.msra.mxu0 %v124
    %138 = vmatpush.bf16.msra.mxu0 %v123
    %139 = vmatpush.bf16.msra.mxu0 %v122
    %140 = vmatpush.bf16.msra.mxu0 %v121
    %141 = vmatpush.bf16.msra.mxu0 %v120
    %142 = vmatpush.bf16.msra.mxu0 %v119
    %143 = vmatmul.bf16.gmra.mxu0 %v85
    %v144 = vpop.f32.mrf.mxu0
    %v145 = vadd.f32 %v79, %v144
    %v146 = vpop.f32.mrf.mxu0
    %v147 = vadd.f32 %v79, %v146
    %148 = vdwg.mxu0
    %v149 = vmul.f32 %v145, 0.5
    %v150 = vmul.f32 %v147, 0.5
    %v151 = vmul.f32 %v145, 0.70710677
    %v152 = vmul.f32 %v147, 0.70710677
    %v153 = vmul.f32 %v151, %v151
    %v154 = vmin.f32 16.0, %v153
    %v155 = vmul.f32 %v154, 2.1237322e-06
    %v156 = vadd.f32 %v155, 0.00028619796
    %v157 = vmul.f32 %v154, %v156
    %v158 = vadd.f32 %v157, 0.0036580483
    %v159 = vmul.f32 %v154, %v158
    %v160 = vadd.f32 %v159, 0.05243302
    %v161 = vmul.f32 %v154, %v160
    %v162 = vadd.f32 %v161, 0.18741608
    %v163 = vmul.f32 %v154, %v162
    %v164 = vadd.f32 %v163, 1.1283791
    %v165 = vmul.f32 %v151, %v164
    %v166 = vmul.f32 %v154, 3.8918573e-05
    %v167 = vadd.f32 %v166, 0.001143296
    %v168 = vmul.f32 %v154, %v167
    %v169 = vadd.f32 %v168, 0.014752088
    %v170 = vmul.f32 %v154, %v169
    %v171 = vadd.f32 %v170, 0.112945676
    %v172 = vmul.f32 %v154, %v171
    %v173 = vadd.f32 %v172, 0.4994258
    %v174 = vmul.f32 %v154, %v173
    %v175 = vadd.f32 %v174, 1.0
    %v176 = vrcp.pop %v175
    %v177 = vmul.f32 %v175, %v176
    %v178 = vsub.f32 1.0, %v177
    %v179 = vmul.f32 %v176, %v178
    %v180 = vadd.f32 %v176, %v179
    %vm181 = vweird.f32 %v175
    %vm182 = vweird.f32 %v176
    %vm183 = vmor %vm181, %vm182
    %v184 = vsel %vm183, %v176, %v180
    %v185 = vand.u32 2147483647, %v175
    %vm186 = vcmp.eq.f32.partialorder %v185, 8.507059e+37
    %v187 = vand.u32 %v175, 2147483648
    %v188 = vor.u32 1.1754944e-38, %v187
    %v189 = vsel %vm186, %v188, %v184
    %v190 = vmul.f32 %v165, %v189
    %v191 = vmin.f32 %v190, 1.0
    %v192 = vmax.f32 %v191, -1.0
    %v193 = vmul.f32 %v152, %v152
    %v194 = vmin.f32 16.0, %v193
    %v195 = vmul.f32 %v194, 2.1237322e-06
    %v196 = vadd.f32 %v195, 0.00028619796
    %v197 = vmul.f32 %v194, %v196
    %v198 = vadd.f32 %v197, 0.0036580483
    %v199 = vmul.f32 %v194, %v198
    %v200 = vadd.f32 %v199, 0.05243302
    %v201 = vmul.f32 %v194, %v200
    %v202 = vadd.f32 %v201, 0.18741608
    %v203 = vmul.f32 %v194, %v202
    %v204 = vadd.f32 %v203, 1.1283791
    %v205 = vmul.f32 %v152, %v204
    %v206 = vmul.f32 %v194, 3.8918573e-05
    %v207 = vadd.f32 %v206, 0.001143296
    %v208 = vmul.f32 %v194, %v207
    %v209 = vadd.f32 %v208, 0.014752088
    %v210 = vmul.f32 %v194, %v209
    %v211 = vadd.f32 %v210, 0.112945676
    %v212 = vmul.f32 %v194, %v211
    %v213 = vadd.f32 %v212, 0.4994258
    %v214 = vmul.f32 %v194, %v213
    %v215 = vadd.f32 %v214, 1.0
    %v216 = vrcp.pop %v215
    %v217 = vmul.f32 %v215, %v216
    %v218 = vsub.f32 1.0, %v217
    %v219 = vmul.f32 %v216, %v218
    %v220 = vadd.f32 %v216, %v219
    %vm221 = vweird.f32 %v215
    %vm222 = vweird.f32 %v216
    %vm223 = vmor %vm221, %vm222
    %v224 = vsel %vm223, %v216, %v220
    %v225 = vand.u32 2147483647, %v215
    %vm226 = vcmp.eq.f32.partialorder %v225, 8.507059e+37
    %v227 = vand.u32 %v215, 2147483648
    %v228 = vor.u32 1.1754944e-38, %v227
    %v229 = vsel %vm226, %v228, %v224
    %v230 = vmul.f32 %v205, %v229
    %v231 = vmin.f32 %v230, 1.0
    %v232 = vmax.f32 %v231, -1.0
    %v233 = vadd.f32 %v192, 1.0
    %v234 = vadd.f32 %v232, 1.0
    %v235 = vmul.f32 %v149, %v233
    %v236 = vmul.f32 %v150, %v234
    %v237 = vld [vmem:[#allocation2] sm:$0xff]
    %v238 = vld [vmem:[#allocation2 + $0x8] sm:$0xff]
    %v239 = vpack.c.bf16 %v236, %v235
    %v240 = vld [vmem:[#allocation6] sm:$0xf]
    %v241 = vld [vmem:[#allocation6 + $0x4] sm:$0xf]
    %v242 = vld [vmem:[#allocation6 + $0x8] sm:$0xf]
    %v243 = vld [vmem:[#allocation6 + $0xc] sm:$0xf]
    %v244 = vld [vmem:[#allocation6 + $0x10] sm:$0xf]
    %v245 = vld [vmem:[#allocation6 + $0x14] sm:$0xf]
    %v246 = vld [vmem:[#allocation6 + $0x18] sm:$0xf]
    %v247 = vld [vmem:[#allocation6 + $0x1c] sm:$0xf]
    %v248 = vld [vmem:[#allocation6 + $0x20] sm:$0xf]
    %v249 = vld [vmem:[#allocation6 + $0x24] sm:$0xf]
    %v250 = vld [vmem:[#allocation6 + $0x28] sm:$0xf]
    %v251 = vld [vmem:[#allocation6 + $0x2c] sm:$0xf]
    %v252 = vld [vmem:[#allocation6 + $0x30] sm:$0xf]
    %v253 = vld [vmem:[#allocation6 + $0x34] sm:$0xf]
    %v254 = vld [vmem:[#allocation6 + $0x38] sm:$0xf]
    %v255 = vld [vmem:[#allocation6 + $0x3c] sm:$0xf]
    %v272 = vunpack.c.l.b16 %v240
    %v273 = vunpack.c.l.b16 %v241
    %v274 = vunpack.c.l.b16 %v242
    %v275 = vunpack.c.l.b16 %v243
    %v276 = vunpack.c.l.b16 %v244
    %v277 = vunpack.c.l.b16 %v245
    %v278 = vunpack.c.l.b16 %v246
    %v279 = vunpack.c.l.b16 %v247
    %v280 = vunpack.c.l.b16 %v248
    %v281 = vunpack.c.l.b16 %v249
    %v282 = vunpack.c.l.b16 %v250
    %v283 = vunpack.c.l.b16 %v251
    %v284 = vunpack.c.l.b16 %v252
    %v285 = vunpack.c.l.b16 %v253
    %v286 = vunpack.c.l.b16 %v254
    %v287 = vunpack.c.l.b16 %v255
    %v288 = vpack.c.b16 %v273, %v272
    %v289 = vpack.c.b16 %v275, %v274
    %v290 = vpack.c.b16 %v277, %v276
    %v291 = vpack.c.b16 %v279, %v278
    %v292 = vpack.c.b16 %v281, %v280
    %v293 = vpack.c.b16 %v283, %v282
    %v294 = vpack.c.b16 %v285, %v284
    %v295 = vpack.c.b16 %v287, %v286
    %304 = vmatpush.bf16.msra.mxu0 %v295
    %305 = vmatpush.bf16.msra.mxu0 %v294
    %306 = vmatpush.bf16.msra.mxu0 %v293
    %307 = vmatpush.bf16.msra.mxu0 %v292
    %308 = vmatpush.bf16.msra.mxu0 %v291
    %309 = vmatpush.bf16.msra.mxu0 %v290
    %310 = vmatpush.bf16.msra.mxu0 %v289
    %311 = vmatpush.bf16.msra.mxu0 %v288
    %312 = vmatmul.bf16.gmra.mxu0 %v239
    %v313 = vpop.f32.mrf.mxu0
    %v314 = vadd.f32 0.0, %v313
    %v315 = vpop.f32.mrf.mxu0
    %v316 = vadd.f32 0.0, %v315
    %317 = vdwg.mxu0
    %v318 = vadd.f32 %v237, %v314
    %v319 = vadd.f32 %v238, %v316
    %320 = vst [vmem:[#allocation2] sm:$0xff] %v318
    %321 = vst [vmem:[#allocation2 + $0x8] sm:$0xff] %v319
    // Predicated region
    $region34: #{_mlp_pallas_impl.1} parent=1 // pred_check
      %p322 = pneg %p53
    $region35: #{_mlp_pallas_impl.1} parent=1 // pred_check_branch
      %324 = sbr.rel (%p322) target = $region37
    $region36: #{_mlp_pallas_impl.1} parent=1 // pred_region
      %v325 = vld [vmem:[#allocation2] sm:$0xff]
      %v326 = vld [vmem:[#allocation2 + $0x8] sm:$0xff]
      %v327 = vld [vmem:[%s4] sm:$0x1]
      %v329 = vperm.slane %v327, 0
      %v331 = vadd.f32 %v325, %v329
      %v332 = vadd.f32 %v326, %v329
      %333 = vst [vmem:[#allocation8] sm:$0xff] %v331
      %334 = vst [vmem:[#allocation8 + $0x8] sm:$0xff] %v332
    $region37: #{_mlp_pallas_impl.1} parent=1 // pred_fallthru
      _
    // Predicated region
    $region38: #{_mlp_pallas_impl.1} parent=1 // pred_check
      _
    $region39: #{_mlp_pallas_impl.1} parent=1 // pred_check_branch
      %336 = sbr.rel (0) target = $region41
    $region40: #{_mlp_pallas_impl.1} parent=1 // pred_region
      %338 = vsyncadd [#allocation5], 0
      %s339 = sshll.u32 [#allocation8], 4
      %s340 = int_to_ptr.vmem [resolvable:$true] %s339
      %s341 = sshll.u32 %s5, 4
      %s342 = int_to_ptr.hbm [resolvable:$true] %s341
      %347 = dma.vmem_to_hbm [thread:$0]  %s340, 256, %s342, [#allocation5], 128, 128, 8
    $region41: #{_mlp_pallas_impl.1} parent=1 // pred_fallthru
      _
    // Predicated region
    $region42: #{_mlp_pallas_impl.1} parent=1 // pred_check
      _
    $region43: #{_mlp_pallas_impl.1} parent=1 // pred_check_branch
      %349 = sbr.rel (0) target = $region45
    $region44: #{_mlp_pallas_impl.1} parent=1 // pred_region
      %351 = dma.done [#allocation5], 256
    $region45: #{_mlp_pallas_impl.1} parent=1 // pred_fallthru
      _
    %352 = vsyncpa [#allocation4], 1
    %353 = vsyncpa [#allocation7], 1
    %354 = vsyncpa [#allocation5], 1

</llo_original>
